<compile_context>
chip_gen: v7x
topology: tpu7x:2x2x1
jax: 0.10.0
libtpu: 0.0.40
codegen_flags: <defaults>
</compile_context>

<pallas_src>
import math

import jax
import jax.numpy as jnp
from jax.experimental import pallas as pl
from jax.experimental.pallas import tpu as pltpu

IN_FEATURES = 256
OUT_FEATURES = 31
OUT_PAD = 128  # lane-dense padded output width


def _round_up(n, m):
    return ((n + m - 1) // m) * m


def _vae_classifier_kernel(x_ref, w_ref, b_ref, o_ref):
    """Fused ReLU -> Linear on one (TILE_B, 256) tile.

    x_ref: (TILE_B, 256) f32 in VMEM
    w_ref: (256, 128)    f32 in VMEM  (PyTorch weight transposed, lane-padded)
    b_ref: (1, 128)      f32 in VMEM  (bias, lane-padded)
    o_ref: (TILE_B, 128) f32 in VMEM  (padded output; wrapper slices [:, :31])
    """
    # F.relu
    x = jnp.maximum(x_ref[...], 0.0)
    # F.dropout(training=False) -> identity (no-op)
    # nn.Linear: x @ W^T + b  (W already stored transposed & padded)
    y = jnp.dot(x, w_ref[...], preferred_element_type=jnp.float32)
    o_ref[...] = (y + b_ref[...]).astype(o_ref.dtype)


def vae_classifier_forward(x, w_t, b, *, tile_b=512):
    """Pallas path. x: (B, 256) f32, w_t: (256, 31) f32, b: (31,) f32 -> (B, 31) f32."""
    B = x.shape[0]
    assert x.shape == (B, IN_FEATURES), x.shape
    assert w_t.shape == (IN_FEATURES, OUT_FEATURES), w_t.shape
    assert b.shape == (OUT_FEATURES,), b.shape

    # Lane-pad weight and bias to a dense 128-wide N.
    w_pad = jnp.zeros((IN_FEATURES, OUT_PAD), jnp.float32).at[:, :OUT_FEATURES].set(
        w_t.astype(jnp.float32)
    )
    b_pad = jnp.zeros((1, OUT_PAD), jnp.float32).at[0, :OUT_FEATURES].set(
        b.astype(jnp.float32)
    )

    # Choose an effective batch tile: multiple of 8, no larger than needed.
    eff_tile = max(8, min(_round_up(tile_b, 8), _round_up(B, 8)))
    b_pad_rows = _round_up(B, eff_tile)
    x_p = x if b_pad_rows == B else jnp.pad(x, ((0, b_pad_rows - B), (0, 0)))
    grid = (b_pad_rows // eff_tile,)

    out_padded = pl.pallas_call(
        _vae_classifier_kernel,
        out_shape=jax.ShapeDtypeStruct((b_pad_rows, OUT_PAD), jnp.float32),
        grid=grid,
        in_specs=[
            pl.BlockSpec((eff_tile, IN_FEATURES), lambda i: (i, 0)),
            pl.BlockSpec((IN_FEATURES, OUT_PAD), lambda i: (0, 0)),
            pl.BlockSpec((1, OUT_PAD), lambda i: (0, 0)),
        ],
        out_specs=pl.BlockSpec((eff_tile, OUT_PAD), lambda i: (i, 0)),
        compiler_params=pltpu.CompilerParams(
            dimension_semantics=("parallel",),
        ),
    )(x_p, w_pad, b_pad)

    return out_padded[:B, :OUT_FEATURES]


def vae_classifier_apply(x, w_t, b, *, tile_b=512, small_batch_threshold=64):
    """Dispatcher: tiny batches go through plain XLA (launch overhead dominates)."""
    if x.shape[0] <= small_batch_threshold:
        return reference_forward(x, w_t, b)
    return vae_classifier_forward(x, w_t, b, tile_b=tile_b)


def init_params(key):
    """Deterministic init matching nn.Linear(256, 31) default.

    PyTorch default: weight, bias ~ U(-1/sqrt(fan_in), 1/sqrt(fan_in)).
    Weight returned already transposed to (in, out) for the kernel.
    """
    k_w, k_b = jax.random.split(key)
    bound = 1.0 / math.sqrt(IN_FEATURES)
    w = jax.random.uniform(
        k_w, (OUT_FEATURES, IN_FEATURES), jnp.float32, minval=-bound, maxval=bound
    )
    b = jax.random.uniform(
        k_b, (OUT_FEATURES,), jnp.float32, minval=-bound, maxval=bound
    )
    return w.T, b  # (256, 31), (31,)


def reference_forward(x, w_t, b):
    """Pure-JAX reference for correctness checking (eval-mode forward)."""
    x = jnp.maximum(x, 0.0)
    return x @ w_t + b[None, :]


if __name__ == "__main__":
    key = jax.random.PRNGKey(0)
    k_x, k_p = jax.random.split(key)

    # Small batch that still exercises multi-step tiling + row padding:
    # B=200 with tile_b=128 -> pad to 256 rows, grid=(2,), lane-pad 31 -> 128.
    B = 200
    x = jax.random.normal(k_x, (B, IN_FEATURES), dtype=jnp.float32)
    w_t, b = init_params(k_p)

    out = vae_classifier_forward(x, w_t, b, tile_b=128)
    out = jax.block_until_ready(out)

    ref = reference_forward(x, w_t, b)
    assert out.shape == (B, OUT_FEATURES), out.shape
    assert jnp.allclose(out, ref, atol=1e-5, rtol=1e-5), "mismatch vs reference"

    # Dispatcher sanity check (tiny-batch fallback path).
    out_small = jax.block_until_ready(vae_classifier_apply(x[:8], w_t, b))
    assert jnp.allclose(out_small, ref[:8], atol=1e-5, rtol=1e-5)

    print("KERNEL_OK")
</pallas_src>

<mosaic_0001>
module attributes {stable_mosaic.version = 11 : i64} {
  func.func @_vae_classifier_kernel(%arg0: i32, %arg1: memref<128x256xf32, #tpu.memory_space<vmem>>, %arg2: memref<256x128xf32, #tpu.memory_space<vmem>>, %arg3: memref<1x128xf32, #tpu.memory_space<vmem>>, %arg4: memref<128x128xf32, #tpu.memory_space<vmem>>) attributes {dimension_semantics = [#tpu.dimension_semantics<parallel>], iteration_bounds = array<i64: 2>, scalar_prefetch = 0 : i64, scratch_operands = 0 : i64, tpu.core_type = #tpu.core_type<tc>, window_params = [{transform_indices = @transform_0, window_bounds = array<i64: 128, 256>}, {pipeline_mode = #tpu.pipeline_mode<synchronous>, transform_indices = @transform_1, window_bounds = array<i64: 256, 128>}, {pipeline_mode = #tpu.pipeline_mode<synchronous>, transform_indices = @transform_2, window_bounds = array<i64: 1, 128>}, {transform_indices = @transform_3, window_bounds = array<i64: 128, 128>}]} {
    %c0 = arith.constant 0 : index
    %c0_0 = arith.constant 0 : index
    %0 = vector.load %arg1[%c0, %c0_0] : memref<128x256xf32, #tpu.memory_space<vmem>>, vector<128x256xf32>
    %cst = arith.constant 0.000000e+00 : f32
    %1 = vector.broadcast %cst : f32 to vector<128x256xf32>
    %2 = arith.maximumf %0, %1 : vector<128x256xf32>
    %c0_1 = arith.constant 0 : index
    %c0_2 = arith.constant 0 : index
    %3 = vector.load %arg2[%c0_1, %c0_2] : memref<256x128xf32, #tpu.memory_space<vmem>>, vector<256x128xf32>
    %cst_3 = arith.constant dense<0.000000e+00> : vector<128x128xf32>
    %4 = tpu.matmul %2, %3, %cst_3 {dimension_numbers = #tpu.dot_dimension_numbers<[1], [0], [0], [1], [0, 0, 1, 1], [], []>} : vector<128x256xf32>, vector<256x128xf32>, vector<128x128xf32> -> vector<128x128xf32>
    %c0_4 = arith.constant 0 : index
    %c0_5 = arith.constant 0 : index
    %5 = vector.load %arg3[%c0_4, %c0_5] : memref<1x128xf32, #tpu.memory_space<vmem>>, vector<1x128xf32>
    %6 = vector.broadcast %5 : vector<1x128xf32> to vector<128x128xf32>
    %7 = arith.addf %4, %6 : vector<128x128xf32>
    %c0_6 = arith.constant 0 : index
    %c0_7 = arith.constant 0 : index
    %8 = vector.load %arg4[%c0_6, %c0_7] : memref<128x128xf32, #tpu.memory_space<vmem>>, vector<128x128xf32>
    tpu.vector_store %arg4[%c0_6, %c0_7], %7 {strides = array<i32>} : memref<128x128xf32, #tpu.memory_space<vmem>>, vector<128x128xf32>,
    return
  }
  func.func @transform_0(%arg0: i32) -> (i32, i32) {
    %c0_i32 = arith.constant 0 : i32
    %c0_i32_0 = arith.constant 0 : i32
    return %arg0, %c0_i32 : i32, i32
  }
  func.func @transform_1(%arg0: i32) -> (i32, i32) {
    %c0_i32 = arith.constant 0 : i32
    %c0_i32_0 = arith.constant 0 : i32
    %c0_i32_1 = arith.constant 0 : i32
    return %c0_i32, %c0_i32_0 : i32, i32
  }
  func.func @transform_2(%arg0: i32) -> (i32, i32) {
    %c0_i32 = arith.constant 0 : i32
    %c0_i32_0 = arith.constant 0 : i32
    %c0_i32_1 = arith.constant 0 : i32
    return %c0_i32, %c0_i32_0 : i32, i32
  }
  func.func @transform_3(%arg0: i32) -> (i32, i32) {
    %c0_i32 = arith.constant 0 : i32
    %c0_i32_0 = arith.constant 0 : i32
    return %arg0, %c0_i32 : i32, i32
  }
}

</mosaic_0001>

<llo_original>
// kernel: tpu_custom_call.1
$region0: #{tpu_custom_call.1}
  #allocation0 [shape = 'u32[]', space=smem, size = 0x4, offset = 0x4, fixed_abs, tag = 'smem constant byte address 0x4 - core index']
  #allocation1 [shape = 'u32[144,128]{1,0:T(1,128)}', space=vmem, size = 0x12000, scoped, tag = 'internal scratch']
  %s0 = inlined_call_operand.hbm [shape: f32[256,256], index: 0, kind: input, shape index: {}]
  %s1 = inlined_call_operand.hbm [shape: f32[256,128], index: 1, kind: input, shape index: {}]
  %s2 = inlined_call_operand.vmem [shape: f32[1,128], index: 2, kind: input, shape index: {}]
  %s3 = inlined_call_operand.hbm [shape: f32[256,128], index: 3, kind: output, shape index: {}]
  %s4 = sld [smem:[#allocation0]]
  $region53: #{tpu_custom_call.1} parent=0
    _
  %s6 = ssub.s32 1, %s4
  %s7 = scalar_select 0, %s6, %s4
  $region1: #{tpu_custom_call.1} parent=0
    #allocation2 [shape = 'u8[262144]{0}', space=vmem, size = 0x40000, scoped, tag = 'input window, operand 0']
    #allocation3 [shape = 's32[2]{0}', space=sflag, size = 0x8, scoped, tag = 'scoped memory for tpu_custom_call.1']
    #allocation4 [shape = 's32[2]{0}', space=sflag, size = 0x8, scoped, tag = 'scoped memory for tpu_custom_call.1']
    #allocation5 [shape = 'u8[131072]{0}', space=vmem, size = 0x20000, scoped, tag = 'input window, operand 1, single buffered']
    #allocation6 [shape = 's32[1]{0}', space=sflag, size = 0x4, scoped, tag = 'scoped memory for tpu_custom_call.1']
    #allocation7 [shape = 'u8[131072]{0}', space=vmem, size = 0x20000, scoped, tag = 'output window, operand 0']
    %8 = vsyncpa [#allocation3], 0
    %s9 = scalar_lea.sflag [#allocation3], 1
    %10 = vsyncpa %s9, 0
    %11 = vsyncpa [#allocation6], 0
    %12 = vsyncpa [#allocation4], 0
    %s13 = scalar_lea.sflag [#allocation4], 1
    %14 = vsyncpa %s13, 0
    loop: start=0, step=1, limit=4
    $region2: #{tpu_custom_call.1} parent=1 // loop_pre_header
      _
    $region3: #{tpu_custom_call.1} parent=1 // loop_header
      %s16 = sphi 0, %s20
      %p17 = scmp.ge.s32.totalorder %s16, 4
      %s26 = sphi 0, %s28
      %s29 = sphi 0, %s26
      %s30 = sphi 0, %s29
      %s46 = sphi 0, %s30
      %s50 = sphi 0, %s50
      %s52 = sphi 0, %s50
      %s53 = sphi 0, %s52
      %s67 = sphi 0, %s53
      %s71 = sphi 0, %s71
      %s73 = sphi 0, %s71
      %s74 = sphi 0, %s73
      %s88 = sphi 0, %s74
      %s94 = sphi 0, %s96
      %s97 = sphi 0, %s94
      %s98 = sphi 0, %s97
      %s114 = sphi 0, %s98
    $region4: #{tpu_custom_call.1} parent=1 // loop_header_branch
      %19 = sbr.rel (%p17) target = $region8
    $region5: #{tpu_custom_call.1} parent=1 // loop_body
      %s21 = ssub.s32 %s16, 1
      %s22 = ssub.s32 %s16, 2
      %s23 = sadd.s32 %s16, 1
      %s24 = ssub.s32 %s16, %s23
      %p25 = scmp.eq.s32.totalorder %s24, 0
      %s27 = sadd.s32 %s26, 1
      %s28 = scalar_select %p25, %s26, %s27
      %p31 = pneg %p25
      %p32 = scmp.eq.s32.totalorder %s16, 1
      %p33 = por %p31, %p32
      %p34 = scmp.ne.s32.totalorder %s26, %s29
      %p35 = scmp.eq.s32.totalorder %s16, 0
      %p36 = por %p34, %p35
      %p37 = scmp.ne.s32.totalorder %s26, %s29
      %p38 = scmp.eq.s32.totalorder %s21, 1
      %p39 = por %p37, %p38
      %p40 = scmp.ne.s32.totalorder %s29, %s30
      %p41 = scmp.eq.s32.totalorder %s21, 0
      %p42 = por %p40, %p41
      %p43 = scmp.ne.s32.totalorder %s29, %s30
      %p44 = scmp.eq.s32.totalorder %s22, 1
      %p45 = por %p43, %p44
      %p47 = scmp.ne.s32.totalorder %s30, %s46
      %p48 = scmp.eq.s32.totalorder %s22, 0
      %p49 = por %p47, %p48
      %s51 = sadd.s32 %s50, 1
      %p54 = scmp.eq.s32.totalorder %s16, 1
      %p55 = scmp.ne.s32.totalorder %s50, %s52
      %p56 = scmp.eq.s32.totalorder %s16, 0
      %p57 = por %p55, %p56
      %p58 = scmp.ne.s32.totalorder %s50, %s52
      %p59 = scmp.eq.s32.totalorder %s21, 1
      %p60 = por %p58, %p59
      %p61 = scmp.ne.s32.totalorder %s52, %s53
      %p62 = scmp.eq.s32.totalorder %s21, 0
      %p63 = por %p61, %p62
      %p64 = scmp.ne.s32.totalorder %s52, %s53
      %p65 = scmp.eq.s32.totalorder %s22, 1
      %p66 = por %p64, %p65
      %p68 = scmp.ne.s32.totalorder %s53, %s67
      %p69 = scmp.eq.s32.totalorder %s22, 0
      %p70 = por %p68, %p69
      %s72 = sadd.s32 %s71, 1
      %p75 = scmp.eq.s32.totalorder %s16, 1
      %p76 = scmp.ne.s32.totalorder %s71, %s73
      %p77 = scmp.eq.s32.totalorder %s16, 0
      %p78 = por %p76, %p77
      %p79 = scmp.ne.s32.totalorder %s71, %s73
      %p80 = scmp.eq.s32.totalorder %s21, 1
      %p81 = por %p79, %p80
      %p82 = scmp.ne.s32.totalorder %s73, %s74
      %p83 = scmp.eq.s32.totalorder %s21, 0
      %p84 = por %p82, %p83
      %p85 = scmp.ne.s32.totalorder %s73, %s74
      %p86 = scmp.eq.s32.totalorder %s22, 1
      %p87 = por %p85, %p86
      %p89 = scmp.ne.s32.totalorder %s74, %s88
      %p90 = scmp.eq.s32.totalorder %s22, 0
      %p91 = por %p89, %p90
      %s92 = ssub.s32 %s16, %s23
      %p93 = scmp.eq.s32.totalorder %s92, 0
      %s95 = sadd.s32 %s94, 1
      %s96 = scalar_select %p93, %s94, %s95
      %p99 = pneg %p93
      %p100 = scmp.eq.s32.totalorder %s16, 1
      %p101 = por %p99, %p100
      %p102 = scmp.ne.s32.totalorder %s94, %s97
      %p103 = scmp.eq.s32.totalorder %s16, 0
      %p104 = por %p102, %p103
      %p105 = scmp.ne.s32.totalorder %s94, %s97
      %p106 = scmp.eq.s32.totalorder %s21, 1
      %p107 = por %p105, %p106
      %p108 = scmp.ne.s32.totalorder %s97, %s98
      %p109 = scmp.eq.s32.totalorder %s21, 0
      %p110 = por %p108, %p109
      %p111 = scmp.ne.s32.totalorder %s97, %s98
      %p112 = scmp.eq.s32.totalorder %s22, 1
      %p113 = por %p111, %p112
      %p115 = scmp.ne.s32.totalorder %s98, %s114
      %p116 = scmp.eq.s32.totalorder %s22, 0
      %p117 = por %p115, %p116
      %p118 = scmp.le.s32.totalorder 1, %s16
      %p119 = scmp.lt.s32.totalorder %s16, 3
      %p120 = pnand %p118, %p119
      %p121 = pneg %p120
      // Predicated region
      $region9: #{tpu_custom_call.1} parent=5 // pred_check
        _
      $region10: #{tpu_custom_call.1} parent=5 // pred_check_branch
        %123 = sbr.rel (%p120) target = $region12
      $region11: #{tpu_custom_call.1} parent=5 // pred_region
        %s124 = ssub.s32 %s16, 1
        // Predicated region
        $region13: #{tpu_custom_call.1} parent=11 // pred_check
          %p125 = pneg %p63
        $region14: #{tpu_custom_call.1} parent=11 // pred_check_branch
          %127 = sbr.rel (%p125) target = $region16
        $region15: #{tpu_custom_call.1} parent=11 // pred_region
          %s129 = ssub.s32 4096, 4096
          %130 = vsyncadd [#allocation6], %s129
          %s131 = sshll.u32 [#allocation5], 4
          %s132 = int_to_ptr.vmem [resolvable:$true] %s131
          %137 = dma.hbm_to_vmem [thread:$0]  %s1, 4096, %s132, [#allocation6], 128, 128, 8
        $region16: #{tpu_custom_call.1} parent=11 // pred_fallthru
          _
        // Predicated region
        $region17: #{tpu_custom_call.1} parent=11 // pred_check
          %p138 = pneg %p84
        $region18: #{tpu_custom_call.1} parent=11 // pred_check_branch
          %140 = sbr.rel (%p138) target = $region20
        $region19: #{tpu_custom_call.1} parent=11 // pred_region
          _
        $region20: #{tpu_custom_call.1} parent=11 // pred_fallthru
          _
      $region12: #{tpu_custom_call.1} parent=5 // pred_fallthru
        _
      %p141 = scmp.lt.s32.totalorder %s16, 2
      // Predicated region
      $region21: #{tpu_custom_call.1} parent=5 // pred_check
        %p142 = pneg %p141
      $region22: #{tpu_custom_call.1} parent=5 // pred_check_branch
        %144 = sbr.rel (%p142) target = $region24
      $region23: #{tpu_custom_call.1} parent=5 // pred_region
        // Predicated region
        $region25: #{tpu_custom_call.1} parent=23 // pred_check
          %p145 = pneg %p36
        $region26: #{tpu_custom_call.1} parent=23 // pred_check_branch
          %147 = sbr.rel (%p145) target = $region28
        $region27: #{tpu_custom_call.1} parent=23 // pred_region
          %s148 = sand.u32 %s26, 1
          %s149 = scalar_lea.sflag [#allocation3], %s148
          %s150 = sand.u32 %s26, 1
          %s151 = smul.addr %s150, 256
          %s152 = scalar_lea.vmem [#allocation2], %s151
          %s153 = smul.u32 16, %s16
          %s155 = ssub.s32 4096, 4096
          %156 = vsyncadd %s149, %s155
          %s157 = smul.addr %s153, 2
          %s158 = smul.addr %s157, 128
          %s159 = scalar_lea.hbm %s0, %s158
          %s160 = sshll.u32 %s152, 4
          %s161 = int_to_ptr.vmem [resolvable:$true] %s160
          %166 = dma.hbm_to_vmem [thread:$0]  %s159, 4096, %s161, %s149, 256, 256, 16
        $region28: #{tpu_custom_call.1} parent=23 // pred_fallthru
          _
      $region24: #{tpu_custom_call.1} parent=5 // pred_fallthru
        _
      %p167 = scmp.le.s32.totalorder 1, %s16
      %p168 = scmp.lt.s32.totalorder %s16, 3
      %p169 = pnand %p167, %p168
      %p170 = pneg %p169
      // Predicated region
      $region29: #{tpu_custom_call.1} parent=5 // pred_check
        _
      $region30: #{tpu_custom_call.1} parent=5 // pred_check_branch
        %172 = sbr.rel (%p169) target = $region32
      $region31: #{tpu_custom_call.1} parent=5 // pred_region
        %s173 = ssub.s32 %s16, 1
        %s174 = sand.u32 %s29, 1
        %s175 = scalar_lea.sflag [#allocation3], %s174
        %s176 = sand.u32 %s29, 1
        %s177 = smul.addr %s176, 256
        %s178 = scalar_lea.vmem [#allocation2], %s177
        // Predicated region
        $region33: #{tpu_custom_call.1} parent=31 // pred_check
          %p179 = pneg %p42
        $region34: #{tpu_custom_call.1} parent=31 // pred_check_branch
          %181 = sbr.rel (%p179) target = $region36
        $region35: #{tpu_custom_call.1} parent=31 // pred_region
          %182 = dma.done %s175, 4096
        $region36: #{tpu_custom_call.1} parent=31 // pred_fallthru
          _
        // Predicated region
        $region37: #{tpu_custom_call.1} parent=31 // pred_check
          %p183 = pneg %p63
        $region38: #{tpu_custom_call.1} parent=31 // pred_check_branch
          %185 = sbr.rel (%p183) target = $region40
        $region39: #{tpu_custom_call.1} parent=31 // pred_region
          %186 = dma.done [#allocation6], 4096
        $region40: #{tpu_custom_call.1} parent=31 // pred_fallthru
          _
        %s187 = sand.u32 %s29, 1
        %s188 = scalar_lea.sflag [#allocation3], %s187
        %s189 = sand.u32 %s29, 1
        %s190 = smul.addr %s189, 256
        %s191 = scalar_lea.vmem [#allocation2], %s190
        %p192 = pneg %p42
        %p193 = pneg %p39
        %p194 = pneg %p63
        %p195 = pneg %p60
        %p196 = pneg %p84
        %p197 = pneg %p81
        %p198 = pneg %p110
        %p199 = pneg %p107
        %s200 = sand.u32 %s97, 1
        %s201 = scalar_lea.sflag [#allocation4], %s200
        %s202 = sand.u32 %s97, 1
        %s203 = smul.addr %s202, 128
        %s204 = scalar_lea.vmem [#allocation7], %s203
        %s205 = smul.u32 16, %s21
        %s206 = smul.u32 16, %s21
        %v207 = vld [vmem:[%s178] sm:$0xff]
        %v208 = vld [vmem:[%s178 + $0x8] sm:$0xff]
        %v209 = vld [vmem:[%s178 + $0x10] sm:$0xff]
        %v210 = vld [vmem:[%s178 + $0x18] sm:$0xff]
        %v211 = vld [vmem:[%s178 + $0x20] sm:$0xff]
        %v212 = vld [vmem:[%s178 + $0x28] sm:$0xff]
        %v213 = vld [vmem:[%s178 + $0x30] sm:$0xff]
        %v214 = vld [vmem:[%s178 + $0x38] sm:$0xff]
        %v215 = vld [vmem:[%s178 + $0x40] sm:$0xff]
        %v216 = vld [vmem:[%s178 + $0x48] sm:$0xff]
        %v217 = vld [vmem:[%s178 + $0x50] sm:$0xff]
        %v218 = vld [vmem:[%s178 + $0x58] sm:$0xff]
        %v219 = vld [vmem:[%s178 + $0x60] sm:$0xff]
        %v220 = vld [vmem:[%s178 + $0x68] sm:$0xff]
        %v221 = vld [vmem:[%s178 + $0x70] sm:$0xff]
        %v222 = vld [vmem:[%s178 + $0x78] sm:$0xff]
        %v223 = vld [vmem:[%s178 + $0x80] sm:$0xff]
        %v224 = vld [vmem:[%s178 + $0x88] sm:$0xff]
        %v225 = vld [vmem:[%s178 + $0x90] sm:$0xff]
        %v226 = vld [vmem:[%s178 + $0x98] sm:$0xff]
        %v227 = vld [vmem:[%s178 + $0xa0] sm:$0xff]
        %v228 = vld [vmem:[%s178 + $0xa8] sm:$0xff]
        %v229 = vld [vmem:[%s178 + $0xb0] sm:$0xff]
        %v230 = vld [vmem:[%s178 + $0xb8] sm:$0xff]
        %v231 = vld [vmem:[%s178 + $0xc0] sm:$0xff]
        %v232 = vld [vmem:[%s178 + $0xc8] sm:$0xff]
        %v233 = vld [vmem:[%s178 + $0xd0] sm:$0xff]
        %v234 = vld [vmem:[%s178 + $0xd8] sm:$0xff]
        %v235 = vld [vmem:[%s178 + $0xe0] sm:$0xff]
        %v236 = vld [vmem:[%s178 + $0xe8] sm:$0xff]
        %v237 = vld [vmem:[%s178 + $0xf0] sm:$0xff]
        %v238 = vld [vmem:[%s178 + $0xf8] sm:$0xff]
        %v239 = vmax.f32 %v207, 0.0
        %v240 = vmax.f32 %v208, 0.0
        %v241 = vmax.f32 %v209, 0.0
        %v242 = vmax.f32 %v210, 0.0
        %v243 = vmax.f32 %v211, 0.0
        %v244 = vmax.f32 %v212, 0.0
        %v245 = vmax.f32 %v213, 0.0
        %v246 = vmax.f32 %v214, 0.0
        %v247 = vmax.f32 %v215, 0.0
        %v248 = vmax.f32 %v216, 0.0
        %v249 = vmax.f32 %v217, 0.0
        %v250 = vmax.f32 %v218, 0.0
        %v251 = vmax.f32 %v219, 0.0
        %v252 = vmax.f32 %v220, 0.0
        %v253 = vmax.f32 %v221, 0.0
        %v254 = vmax.f32 %v222, 0.0
        %v255 = vmax.f32 %v223, 0.0
        %v256 = vmax.f32 %v224, 0.0
        %v257 = vmax.f32 %v225, 0.0
        %v258 = vmax.f32 %v226, 0.0
        %v259 = vmax.f32 %v227, 0.0
        %v260 = vmax.f32 %v228, 0.0
        %v261 = vmax.f32 %v229, 0.0
        %v262 = vmax.f32 %v230, 0.0
        %v263 = vmax.f32 %v231, 0.0
        %v264 = vmax.f32 %v232, 0.0
        %v265 = vmax.f32 %v233, 0.0
        %v266 = vmax.f32 %v234, 0.0
        %v267 = vmax.f32 %v235, 0.0
        %v268 = vmax.f32 %v236, 0.0
        %v269 = vmax.f32 %v237, 0.0
        %v270 = vmax.f32 %v238, 0.0
        %v271 = vld [vmem:[#allocation5] sm:$0xff]
        %v272 = vld [vmem:[#allocation5 + $0x8] sm:$0xff]
        %v273 = vld [vmem:[#allocation5 + $0x10] sm:$0xff]
        %v274 = vld [vmem:[#allocation5 + $0x18] sm:$0xff]
        %v275 = vld [vmem:[#allocation5 + $0x20] sm:$0xff]
        %v276 = vld [vmem:[#allocation5 + $0x28] sm:$0xff]
        %v277 = vld [vmem:[#allocation5 + $0x30] sm:$0xff]
        %v278 = vld [vmem:[#allocation5 + $0x38] sm:$0xff]
        %v279 = vld [vmem:[#allocation5 + $0x40] sm:$0xff]
        %v280 = vld [vmem:[#allocation5 + $0x48] sm:$0xff]
        %v281 = vld [vmem:[#allocation5 + $0x50] sm:$0xff]
        %v282 = vld [vmem:[#allocation5 + $0x58] sm:$0xff]
        %v283 = vld [vmem:[#allocation5 + $0x60] sm:$0xff]
        %v284 = vld [vmem:[#allocation5 + $0x68] sm:$0xff]
        %v285 = vld [vmem:[#allocation5 + $0x70] sm:$0xff]
        %v286 = vld [vmem:[#allocation5 + $0x78] sm:$0xff]
        %v287 = vld [vmem:[#allocation5 + $0x80] sm:$0xff]
        %v288 = vld [vmem:[#allocation5 + $0x88] sm:$0xff]
        %v289 = vld [vmem:[#allocation5 + $0x90] sm:$0xff]
        %v290 = vld [vmem:[#allocation5 + $0x98] sm:$0xff]
        %v291 = vld [vmem:[#allocation5 + $0xa0] sm:$0xff]
        %v292 = vld [vmem:[#allocation5 + $0xa8] sm:$0xff]
        %v293 = vld [vmem:[#allocation5 + $0xb0] sm:$0xff]
        %v294 = vld [vmem:[#allocation5 + $0xb8] sm:$0xff]
        %v295 = vld [vmem:[#allocation5 + $0xc0] sm:$0xff]
        %v296 = vld [vmem:[#allocation5 + $0xc8] sm:$0xff]
        %v297 = vld [vmem:[#allocation5 + $0xd0] sm:$0xff]
        %v298 = vld [vmem:[#allocation5 + $0xd8] sm:$0xff]
        %v299 = vld [vmem:[#allocation5 + $0xe0] sm:$0xff]
        %v300 = vld [vmem:[#allocation5 + $0xe8] sm:$0xff]
        %v301 = vld [vmem:[#allocation5 + $0xf0] sm:$0xff]
        %v302 = vld [vmem:[#allocation5 + $0xf8] sm:$0xff]
        %v303 = vld [vmem:[%s2] sm:$0x1]
        %v305 = vlaneseq
        %v306 = vshrl.u32 %v305, 7
        %v307 = vsub.s32 0, %v306
        %v308 = vrot.slane %v303, %v307
        %310 = vmatprep.subr.mxu0 0.0
        %311 = vmatpush1.msra.mxu0 %v271
        %312 = vmatprep.subr.mxu0 0.0
        %313 = vmatpush1.msra.mxu0 %v272
        %314 = vmatprep.subr.mxu0 0.0
        %315 = vmatpush1.msra.mxu0 %v273
        %316 = vmatprep.subr.mxu0 0.0
        %317 = vmatpush1.msra.mxu0 %v274
        %318 = vmatprep.subr.mxu0 0.0
        %319 = vmatpush1.msra.mxu0 %v275
        %320 = vmatprep.subr.mxu0 0.0
        %321 = vmatpush1.msra.mxu0 %v276
        %322 = vmatprep.subr.mxu0 0.0
        %323 = vmatpush1.msra.mxu0 %v277
        %324 = vmatprep.subr.mxu0 0.0
        %325 = vmatpush1.msra.mxu0 %v278
        %326 = vmatprep.subr.mxu0 0.0
        %327 = vmatpush1.msra.mxu0 %v279
        %328 = vmatprep.subr.mxu0 0.0
        %329 = vmatpush1.msra.mxu0 %v280
        %330 = vmatprep.subr.mxu0 0.0
        %331 = vmatpush1.msra.mxu0 %v281
        %332 = vmatprep.subr.mxu0 0.0
        %333 = vmatpush1.msra.mxu0 %v282
        %334 = vmatprep.subr.mxu0 0.0
        %335 = vmatpush1.msra.mxu0 %v283
        %336 = vmatprep.subr.mxu0 0.0
        %337 = vmatpush1.msra.mxu0 %v284
        %338 = vmatprep.subr.mxu0 0.0
        %339 = vmatpush1.msra.mxu0 %v285
        %340 = vmatprep.subr.mxu0 0.0
        %341 = vmatpush1.msra.mxu0 %v286
        %342 = vmatprep.subr.mxu0 0.0
        %343 = vmatpush1.msra.mxu0 %v287
        %344 = vmatprep.subr.mxu0 0.0
        %345 = vmatpush1.msra.mxu0 %v288
        %346 = vmatprep.subr.mxu0 0.0
        %347 = vmatpush1.msra.mxu0 %v289
        %348 = vmatprep.subr.mxu0 0.0
        %349 = vmatpush1.msra.mxu0 %v290
        %350 = vmatprep.subr.mxu0 0.0
        %351 = vmatpush1.msra.mxu0 %v291
        %352 = vmatprep.subr.mxu0 0.0
        %353 = vmatpush1.msra.mxu0 %v292
        %354 = vmatprep.subr.mxu0 0.0
        %355 = vmatpush1.msra.mxu0 %v293
        %356 = vmatprep.subr.mxu0 0.0
        %357 = vmatpush1.msra.mxu0 %v294
        %358 = vmatprep.subr.mxu0 0.0
        %359 = vmatpush1.msra.mxu0 %v295
        %360 = vmatprep.subr.mxu0 0.0
        %361 = vmatpush1.msra.mxu0 %v296
        %362 = vmatprep.subr.mxu0 0.0
        %363 = vmatpush1.msra.mxu0 %v297
        %364 = vmatprep.subr.mxu0 0.0
        %365 = vmatpush1.msra.mxu0 %v298
        %366 = vmatprep.subr.mxu0 0.0
        %367 = vmatpush1.msra.mxu0 %v299
        %368 = vmatprep.subr.mxu0 0.0
        %369 = vmatpush1.msra.mxu0 %v300
        %370 = vmatprep.subr.mxu0 0.0
        %371 = vmatpush1.msra.mxu0 %v301
        %372 = vmatprep.subr.mxu0 0.0
        %373 = vmatpush1.msra.mxu0 %v302
        %374 = vmatprep.mubr.f32.mxu0 %v240
        %375 = vmatmul.mubr.f32.gmra.mrb[0].mxu0 %v239
        %v376 = vpop.f32.mrb[0].mxu0
        %v377 = vadd.f32 %v308, %v376
        %v378 = vpop.f32.mrb[0].mxu0
        %379 = vmatprep.mubr.f32.mxu0 %v242
        %380 = vmatmul.mubr.f32.gmra.mrb[0].mxu0 %v241
        %v381 = vpop.f32.mrb[0].mxu0
        %v382 = vadd.f32 %v308, %v381
        %v383 = vpop.f32.mrb[0].mxu0
        %384 = vmatprep.mubr.f32.mxu0 %v244
        %385 = vmatmul.mubr.f32.gmra.mrb[0].mxu0 %v243
        %v386 = vpop.f32.mrb[0].mxu0
        %v387 = vadd.f32 %v308, %v386
        %v388 = vpop.f32.mrb[0].mxu0
        %389 = vmatprep.mubr.f32.mxu0 %v246
        %390 = vmatmul.mubr.f32.gmra.mrb[0].mxu0 %v245
        %v391 = vpop.f32.mrb[0].mxu0
        %v392 = vadd.f32 %v308, %v391
        %v393 = vpop.f32.mrb[0].mxu0
        %394 = vmatprep.mubr.f32.mxu0 %v248
        %395 = vmatmul.mubr.f32.gmra.mrb[0].mxu0 %v247
        %v396 = vpop.f32.mrb[0].mxu0
        %v397 = vadd.f32 %v308, %v396
        %v398 = vpop.f32.mrb[0].mxu0
        %399 = vmatprep.mubr.f32.mxu0 %v250
        %400 = vmatmul.mubr.f32.gmra.mrb[0].mxu0 %v249
        %v401 = vpop.f32.mrb[0].mxu0
        %v402 = vadd.f32 %v308, %v401
        %v403 = vpop.f32.mrb[0].mxu0
        %404 = vmatprep.mubr.f32.mxu0 %v252
        %405 = vmatmul.mubr.f32.gmra.mrb[0].mxu0 %v251
        %v406 = vpop.f32.mrb[0].mxu0
        %v407 = vadd.f32 %v308, %v406
        %v408 = vpop.f32.mrb[0].mxu0
        %409 = vmatprep.mubr.f32.mxu0 %v254
        %410 = vmatmul.mubr.f32.gmra.mrb[0].mxu0 %v253
        %v411 = vpop.f32.mrb[0].mxu0
        %v412 = vadd.f32 %v308, %v411
        %v413 = vpop.f32.mrb[0].mxu0
        %414 = vmatprep.mubr.f32.mxu0 %v256
        %415 = vmatmul.mubr.f32.gmra.mrb[0].mxu0 %v255
        %v416 = vpop.f32.mrb[0].mxu0
        %v417 = vadd.f32 %v308, %v416
        %v418 = vpop.f32.mrb[0].mxu0
        %419 = vmatprep.mubr.f32.mxu0 %v258
        %420 = vmatmul.mubr.f32.gmra.mrb[0].mxu0 %v257
        %v421 = vpop.f32.mrb[0].mxu0
        %v422 = vadd.f32 %v308, %v421
        %v423 = vpop.f32.mrb[0].mxu0
        %424 = vmatprep.mubr.f32.mxu0 %v260
        %425 = vmatmul.mubr.f32.gmra.mrb[0].mxu0 %v259
        %v426 = vpop.f32.mrb[0].mxu0
        %v427 = vadd.f32 %v308, %v426
        %v428 = vpop.f32.mrb[0].mxu0
        %429 = vmatprep.mubr.f32.mxu0 %v262
        %430 = vmatmul.mubr.f32.gmra.mrb[0].mxu0 %v261
        %v431 = vpop.f32.mrb[0].mxu0
        %v432 = vadd.f32 %v308, %v431
        %v433 = vpop.f32.mrb[0].mxu0
        %434 = vmatprep.mubr.f32.mxu0 %v264
        %435 = vmatmul.mubr.f32.gmra.mrb[0].mxu0 %v263
        %v436 = vpop.f32.mrb[0].mxu0
        %v437 = vadd.f32 %v308, %v436
        %v438 = vpop.f32.mrb[0].mxu0
        %439 = vmatprep.mubr.f32.mxu0 %v266
        %440 = vmatmul.mubr.f32.gmra.mrb[0].mxu0 %v265
        %v441 = vpop.f32.mrb[0].mxu0
        %v442 = vadd.f32 %v308, %v441
        %v443 = vpop.f32.mrb[0].mxu0
        %444 = vmatprep.mubr.f32.mxu0 %v268
        %445 = vmatmul.mubr.f32.gmra.mrb[0].mxu0 %v267
        %v446 = vpop.f32.mrb[0].mxu0
        %v447 = vadd.f32 %v308, %v446
        %v448 = vpop.f32.mrb[0].mxu0
        %449 = vmatprep.mubr.f32.mxu0 %v270
        %450 = vmatmul.mubr.f32.gmra.mrb[0].mxu0 %v269
        %v451 = vpop.f32.mrb[0].mxu0
        %v452 = vadd.f32 %v308, %v451
        %v453 = vpop.f32.mrb[0].mxu0
        %454 = vdwg.mxu0
        %455 = vst [vmem:[%s204] sm:$0xff] %v377
        %456 = vst [vmem:[%s204 + $0x8] sm:$0xff] %v382
        %457 = vst [vmem:[%s204 + $0x10] sm:$0xff] %v387
        %458 = vst [vmem:[%s204 + $0x18] sm:$0xff] %v392
        %459 = vst [vmem:[%s204 + $0x20] sm:$0xff] %v397
        %460 = vst [vmem:[%s204 + $0x28] sm:$0xff] %v402
        %461 = vst [vmem:[%s204 + $0x30] sm:$0xff] %v407
        %462 = vst [vmem:[%s204 + $0x38] sm:$0xff] %v412
        %463 = vst [vmem:[%s204 + $0x40] sm:$0xff] %v417
        %464 = vst [vmem:[%s204 + $0x48] sm:$0xff] %v422
        %465 = vst [vmem:[%s204 + $0x50] sm:$0xff] %v427
        %466 = vst [vmem:[%s204 + $0x58] sm:$0xff] %v432
        %467 = vst [vmem:[%s204 + $0x60] sm:$0xff] %v437
        %468 = vst [vmem:[%s204 + $0x68] sm:$0xff] %v442
        %469 = vst [vmem:[%s204 + $0x70] sm:$0xff] %v447
        %470 = vst [vmem:[%s204 + $0x78] sm:$0xff] %v452
        %s471 = sand.u32 %s97, 1
        %s472 = scalar_lea.sflag [#allocation4], %s471
        %s473 = sand.u32 %s97, 1
        %s474 = smul.addr %s473, 128
        %s475 = scalar_lea.vmem [#allocation7], %s474
        // Predicated region
        $region41: #{tpu_custom_call.1} parent=31 // pred_check
          %p476 = pneg %p107
        $region42: #{tpu_custom_call.1} parent=31 // pred_check_branch
          %478 = sbr.rel (%p476) target = $region44
        $region43: #{tpu_custom_call.1} parent=31 // pred_region
          %s479 = smul.u32 16, %s21
          %s481 = ssub.s32 2048, 2048
          %482 = vsyncadd %s472, %s481
          %s483 = smul.addr %s479, 128
          %s484 = scalar_lea.hbm %s3, %s483
          %s485 = sshll.u32 %s475, 4
          %s486 = int_to_ptr.vmem [resolvable:$true] %s485
          %491 = dma.vmem_to_hbm [thread:$0]  %s486, 2048, %s484, %s472, 128, 128, 8
        $region44: #{tpu_custom_call.1} parent=31 // pred_fallthru
          _
      $region32: #{tpu_custom_call.1} parent=5 // pred_fallthru
        _
      %p492 = scmp.le.s32.totalorder 2, %s16
      // Predicated region
      $region45: #{tpu_custom_call.1} parent=5 // pred_check
        %p493 = pneg %p492
      $region46: #{tpu_custom_call.1} parent=5 // pred_check_branch
        %495 = sbr.rel (%p493) target = $region48
      $region47: #{tpu_custom_call.1} parent=5 // pred_region
        %s496 = ssub.s32 %s16, 2
        // Predicated region
        $region49: #{tpu_custom_call.1} parent=47 // pred_check
          %p497 = pneg %p113
        $region50: #{tpu_custom_call.1} parent=47 // pred_check_branch
          %499 = sbr.rel (%p497) target = $region52
        $region51: #{tpu_custom_call.1} parent=47 // pred_region
          %s500 = sand.u32 %s98, 1
          %s501 = scalar_lea.sflag [#allocation4], %s500
          %s502 = sand.u32 %s98, 1
          %s503 = smul.addr %s502, 128
          %s504 = scalar_lea.vmem [#allocation7], %s503
          %505 = dma.done %s501, 2048
        $region52: #{tpu_custom_call.1} parent=47 // pred_fallthru
          _
      $region48: #{tpu_custom_call.1} parent=5 // pred_fallthru
        _
    $region6: #{tpu_custom_call.1} parent=1 // loop_footer
      %s20 = sadd.s32 1, %s16
    $region7: #{tpu_custom_call.1} parent=1 // loop_footer_branch
      %15 = sbr.rel target = $region3
    $region8: #{tpu_custom_call.1} parent=1 // loop_exit
      _
    %506 = vsyncpa [#allocation3], 1
    %s507 = scalar_lea.sflag [#allocation3], 1
    %508 = vsyncpa %s507, 1
    %509 = vsyncpa [#allocation6], 1
    %510 = vsyncpa [#allocation4], 1
    %s511 = scalar_lea.sflag [#allocation4], 1
    %512 = vsyncpa %s511, 1

</llo_original>
